<compile_context>
chip_gen: v7x
topology: tpu7x:2x2x1
jax: 0.10.0
libtpu: 0.0.40
codegen_flags: <defaults>
</compile_context>

<pallas_src>
import functools

import jax
import jax.numpy as jnp
from jax.experimental import pallas as pl
from jax.experimental.pallas import tpu as pltpu


def _tap_offsets(W):
    """Non-center 3x3 taps in (kh, kw) raster order (center (1,1) excluded)."""
    taps = []
    for kh in range(3):
        for kw in range(3):
            if kh == 1 and kw == 1:
                continue
            taps.append((kh, kw, (kh - 1) * W + (kw - 1)))
    return taps


def _make_border_masks(H, W, lane):
    """(8, lane) f32 masks, one per non-center tap, zeroing padded/border taps.

    Positions repeat with period H*W along the lane axis, so the same masks
    also zero any roll wraparound between images folded into the lane axis.
    """
    HW = H * W
    pos = jnp.arange(lane, dtype=jnp.int32) % HW
    row = pos // W
    col = pos % W
    rows = []
    for kh, kw, _ in _tap_offsets(W):
        m = jnp.ones((lane,), jnp.bool_)
        if kh == 0:
            m = m & (row >= 1)
        elif kh == 2:
            m = m & (row < H - 1)
        if kw == 0:
            m = m & (col >= 1)
        elif kw == 2:
            m = m & (col < W - 1)
        rows.append(m)
    return jnp.stack(rows, axis=0).astype(jnp.float32)


def _basic_block_kernel(x_ref, masks_ref, w1_ref, b1_ref, w2_ref, b2_ref,
                        out_ref, *, shifts):
    """Fused BasicBlock forward for one block of images.

    x_ref    : (1, C, LANE)   channels in sublanes, folded batch*spatial in lanes
    masks_ref: (8, LANE)      precomputed border masks (non-center taps)
    w*_ref   : (Cout, 9*Cin)  im2col-stacked conv weights, BN scale folded in
    b*_ref   : (Cout, 1)      BN bias
    out_ref  : (1, C, LANE)
    """
    x = x_ref[0].astype(jnp.float32)          # (C, LANE)
    masks = masks_ref[...]                    # (8, LANE)

    def im2col(v):
        # (9*Cin, LANE): taps in (kh, kw) raster order, matching weight layout.
        cols = []
        t = 0
        for kh in range(3):
            for kw in range(3):
                if kh == 1 and kw == 1:
                    cols.append(v)                                  # center tap
                else:
                    rolled = pltpu.roll(v, shifts[t], 1)            # XLU slot
                    cols.append(rolled * masks[t:t + 1])            # (Cin, LANE)
                    t += 1
        return jnp.concatenate(cols, axis=0)

    # conv1 -> bn1 (scale folded) -> relu : single stacked matmul, stays on-chip.
    h = jnp.maximum(
        jnp.dot(w1_ref[...], im2col(x), preferred_element_type=jnp.float32)
        + b1_ref[...], 0.0)
    # conv2 -> bn2 -> + residual -> relu
    y = jnp.maximum(
        jnp.dot(w2_ref[...], im2col(h), preferred_element_type=jnp.float32)
        + b2_ref[...] + x, 0.0)

    out_ref[0] = y.astype(out_ref.dtype)


def basic_block_forward(x_nchw, w1, scale1, bias1, w2, scale2, bias2):
    """Fused BasicBlock: conv3x3->BN->ReLU->conv3x3->BN->(+x)->ReLU (stride 1)."""
    N, C, H, W = x_nchw.shape
    HW = H * W
    planes = w1.shape[-1]
    assert w1.shape == (3, 3, C, planes)
    assert w2.shape == (3, 3, planes, planes)
    assert planes == C, "identity residual requires inplanes == planes"

    # Fold the batch into the lane axis (amortizes grid-step overhead and widens
    # the matmul lane dim), bounded so one block stays vreg/VMEM friendly.
    lane_target = 2048
    imgs_per_block = max(1, min(N, lane_target // HW)) if HW <= lane_target else 1
    while N % imgs_per_block != 0:
        imgs_per_block -= 1
    n_blocks = N // imgs_per_block
    LANE = imgs_per_block * HW

    # Fold BN scale into the conv weights (conv and BN are both linear), then
    # reshape HWIO -> (Cout, kh*kw*Cin) to match the im2col row order.
    def fold_stack(w, scale):
        wf = w * scale[None, None, None, :]                  # (3,3,Cin,Cout)
        wf = jnp.transpose(wf, (3, 0, 1, 2))                 # (Cout,3,3,Cin)
        return wf.reshape(wf.shape[0], -1).astype(jnp.float32)

    w1s = fold_stack(w1, scale1)                             # (planes, 9*C)
    w2s = fold_stack(w2, scale2)                             # (planes, 9*planes)
    b1 = bias1.reshape(planes, 1).astype(jnp.float32)
    b2 = bias2.reshape(planes, 1).astype(jnp.float32)

    # Static per-tap lane rotations and the matching precomputed border masks.
    shifts = tuple((-d) % LANE for _, _, d in _tap_offsets(W))
    masks = _make_border_masks(H, W, LANE)                   # (8, LANE)

    # NCHW -> (n_blocks, C, LANE): free row-major reshape, no transpose, no pad.
    x_flat = jnp.transpose(x_nchw.reshape(n_blocks, imgs_per_block, C, HW),
                           (0, 2, 1, 3)).reshape(n_blocks, C, LANE) \
        if imgs_per_block > 1 else x_nchw.reshape(n_blocks, C, LANE)

    kernel = functools.partial(_basic_block_kernel, shifts=shifts)

    out_flat = pl.pallas_call(
        kernel,
        out_shape=jax.ShapeDtypeStruct((n_blocks, C, LANE), x_nchw.dtype),
        grid=(n_blocks,),
        in_specs=[
            pl.BlockSpec((1, C, LANE), lambda n: (n, 0, 0)),
            pl.BlockSpec((8, LANE), lambda n: (0, 0)),
            pl.BlockSpec((planes, 9 * C), lambda n: (0, 0)),
            pl.BlockSpec((planes, 1), lambda n: (0, 0)),
            pl.BlockSpec((planes, 9 * planes), lambda n: (0, 0)),
            pl.BlockSpec((planes, 1), lambda n: (0, 0)),
        ],
        out_specs=pl.BlockSpec((1, C, LANE), lambda n: (n, 0, 0)),
        compiler_params=pltpu.CompilerParams(
            dimension_semantics=("parallel",),
            vmem_limit_bytes=32 * 1024 * 1024,
        ),
    )(x_flat, masks, w1s, b1, w2s, b2)

    if imgs_per_block > 1:
        out = jnp.transpose(out_flat.reshape(n_blocks, C, imgs_per_block, HW),
                            (0, 2, 1, 3)).reshape(N, C, H, W)
    else:
        out = out_flat.reshape(N, C, H, W)
    return out


class BasicBlockPallas:
    """BasicBlock with PyTorch-default eval BN stats (gamma=1, beta=0, mean=0, var=1)."""

    expansion = 1

    def __init__(self, key, inplanes, planes, stride=1):
        assert stride == 1 and inplanes == planes
        k1, k2 = jax.random.split(key)
        std1 = (2.0 / (inplanes * 9)) ** 0.5
        std2 = (2.0 / (planes * 9)) ** 0.5
        # HWIO weights (PyTorch conv weight is OIHW; equivalent up to transpose).
        self.w1 = jax.random.normal(k1, (3, 3, inplanes, planes), jnp.float32) * std1
        self.w2 = jax.random.normal(k2, (3, 3, planes, planes), jnp.float32) * std2
        eps = 1e-5
        self.scale1 = jnp.ones((planes,), jnp.float32) / jnp.sqrt(1.0 + eps)
        self.bias1 = jnp.zeros((planes,), jnp.float32)
        self.scale2 = jnp.ones((planes,), jnp.float32) / jnp.sqrt(1.0 + eps)
        self.bias2 = jnp.zeros((planes,), jnp.float32)

    def __call__(self, x_nchw):
        return basic_block_forward(x_nchw, self.w1, self.scale1, self.bias1,
                                   self.w2, self.scale2, self.bias2)


def _reference(x_nchw, blk):
    def conv(x, w):
        return jax.lax.conv_general_dilated(
            x, w, window_strides=(1, 1), padding=((1, 1), (1, 1)),
            dimension_numbers=("NCHW", "HWIO", "NCHW"))

    out = conv(x_nchw, blk.w1)
    out = out * blk.scale1[None, :, None, None] + blk.bias1[None, :, None, None]
    out = jnp.maximum(out, 0.0)
    out = conv(out, blk.w2)
    out = out * blk.scale2[None, :, None, None] + blk.bias2[None, :, None, None]
    out = out + x_nchw
    return jnp.maximum(out, 0.0)


if __name__ == "__main__":
    key = jax.random.PRNGKey(0)
    kx, kp = jax.random.split(key)

    N, C, H, W = 2, 4, 16, 16           # inplanes = planes = 4
    x = jax.random.normal(kx, (N, C, H, W), jnp.float32)

    block = BasicBlockPallas(kp, inplanes=C, planes=C, stride=1)

    out = jax.block_until_ready(block(x))
    ref = jax.block_until_ready(_reference(x, block))

    assert out.shape == (N, C, H, W)
    assert jnp.max(jnp.abs(out - ref)) < 1e-4

    print("KERNEL_OK")
</pallas_src>

<mosaic_0001>
module attributes {stable_mosaic.version = 11 : i64} {
  func.func @_basic_block_kernel(%arg0: i32, %arg1: memref<1x4x512xf32, #tpu.memory_space<vmem>>, %arg2: memref<8x512xf32, #tpu.memory_space<vmem>>, %arg3: memref<4x36xf32, #tpu.memory_space<vmem>>, %arg4: memref<4x1xf32, #tpu.memory_space<vmem>>, %arg5: memref<4x36xf32, #tpu.memory_space<vmem>>, %arg6: memref<4x1xf32, #tpu.memory_space<vmem>>, %arg7: memref<1x4x512xf32, #tpu.memory_space<vmem>>) attributes {dimension_semantics = [#tpu.dimension_semantics<parallel>], iteration_bounds = array<i64: 1>, scalar_prefetch = 0 : i64, scratch_operands = 0 : i64, tpu.core_type = #tpu.core_type<tc>, window_params = [{transform_indices = @transform_0, window_bounds = array<i64: 1, 4, 512>}, {pipeline_mode = #tpu.pipeline_mode<synchronous>, transform_indices = @transform_1, window_bounds = array<i64: 8, 512>}, {pipeline_mode = #tpu.pipeline_mode<synchronous>, transform_indices = @transform_2, window_bounds = array<i64: 4, 36>}, {pipeline_mode = #tpu.pipeline_mode<synchronous>, transform_indices = @transform_3, window_bounds = array<i64: 4, 1>}, {pipeline_mode = #tpu.pipeline_mode<synchronous>, transform_indices = @transform_4, window_bounds = array<i64: 4, 36>}, {pipeline_mode = #tpu.pipeline_mode<synchronous>, transform_indices = @transform_5, window_bounds = array<i64: 4, 1>}, {transform_indices = @transform_6, window_bounds = array<i64: 1, 4, 512>}]} {
    %c0 = arith.constant 0 : index
    %c0_0 = arith.constant 0 : index
    %c0_1 = arith.constant 0 : index
    %0 = vector.load %arg1[%c0, %c0_0, %c0_1] : memref<1x4x512xf32, #tpu.memory_space<vmem>>, vector<1x4x512xf32>
    %1 = vector.shape_cast %0 : vector<1x4x512xf32> to vector<4x512xf32>
    %c0_2 = arith.constant 0 : index
    %c0_3 = arith.constant 0 : index
    %2 = vector.load %arg2[%c0_2, %c0_3] : memref<8x512xf32, #tpu.memory_space<vmem>>, vector<8x512xf32>
    %c0_4 = arith.constant 0 : index
    %c0_5 = arith.constant 0 : index
    %3 = vector.load %arg3[%c0_4, %c0_5] : memref<4x36xf32, #tpu.memory_space<vmem>>, vector<4x36xf32>
    %c17_i32 = arith.constant 17 : i32
    %4 = tpu.dynamic_rotate %1 by %c17_i32 dim 1 : vector<4x512xf32>, i32 -> vector<4x512xf32>
    %5 = vector.extract_strided_slice %2 {offsets = [0, 0], sizes = [1, 512], strides = [1, 1]} : vector<8x512xf32> to vector<1x512xf32>
    %6 = vector.broadcast %5 : vector<1x512xf32> to vector<4x512xf32>
    %7 = arith.mulf %4, %6 : vector<4x512xf32>
    %c16_i32 = arith.constant 16 : i32
    %8 = tpu.dynamic_rotate %1 by %c16_i32 dim 1 : vector<4x512xf32>, i32 -> vector<4x512xf32>
    %9 = vector.extract_strided_slice %2 {offsets = [1, 0], sizes = [1, 512], strides = [1, 1]} : vector<8x512xf32> to vector<1x512xf32>
    %10 = vector.broadcast %9 : vector<1x512xf32> to vector<4x512xf32>
    %11 = arith.mulf %8, %10 : vector<4x512xf32>
    %c15_i32 = arith.constant 15 : i32
    %12 = tpu.dynamic_rotate %1 by %c15_i32 dim 1 : vector<4x512xf32>, i32 -> vector<4x512xf32>
    %13 = vector.extract_strided_slice %2 {offsets = [2, 0], sizes = [1, 512], strides = [1, 1]} : vector<8x512xf32> to vector<1x512xf32>
    %14 = vector.broadcast %13 : vector<1x512xf32> to vector<4x512xf32>
    %15 = arith.mulf %12, %14 : vector<4x512xf32>
    %c1_i32 = arith.constant 1 : i32
    %16 = tpu.dynamic_rotate %1 by %c1_i32 dim 1 : vector<4x512xf32>, i32 -> vector<4x512xf32>
    %17 = vector.extract_strided_slice %2 {offsets = [3, 0], sizes = [1, 512], strides = [1, 1]} : vector<8x512xf32> to vector<1x512xf32>
    %18 = vector.broadcast %17 : vector<1x512xf32> to vector<4x512xf32>
    %19 = arith.mulf %16, %18 : vector<4x512xf32>
    %c511_i32 = arith.constant 511 : i32
    %20 = tpu.dynamic_rotate %1 by %c511_i32 dim 1 : vector<4x512xf32>, i32 -> vector<4x512xf32>
    %21 = vector.extract_strided_slice %2 {offsets = [4, 0], sizes = [1, 512], strides = [1, 1]} : vector<8x512xf32> to vector<1x512xf32>
    %22 = vector.broadcast %21 : vector<1x512xf32> to vector<4x512xf32>
    %23 = arith.mulf %20, %22 : vector<4x512xf32>
    %c497_i32 = arith.constant 497 : i32
    %24 = tpu.dynamic_rotate %1 by %c497_i32 dim 1 : vector<4x512xf32>, i32 -> vector<4x512xf32>
    %25 = vector.extract_strided_slice %2 {offsets = [5, 0], sizes = [1, 512], strides = [1, 1]} : vector<8x512xf32> to vector<1x512xf32>
    %26 = vector.broadcast %25 : vector<1x512xf32> to vector<4x512xf32>
    %27 = arith.mulf %24, %26 : vector<4x512xf32>
    %c496_i32 = arith.constant 496 : i32
    %28 = tpu.dynamic_rotate %1 by %c496_i32 dim 1 : vector<4x512xf32>, i32 -> vector<4x512xf32>
    %29 = vector.extract_strided_slice %2 {offsets = [6, 0], sizes = [1, 512], strides = [1, 1]} : vector<8x512xf32> to vector<1x512xf32>
    %30 = vector.broadcast %29 : vector<1x512xf32> to vector<4x512xf32>
    %31 = arith.mulf %28, %30 : vector<4x512xf32>
    %c495_i32 = arith.constant 495 : i32
    %32 = tpu.dynamic_rotate %1 by %c495_i32 dim 1 : vector<4x512xf32>, i32 -> vector<4x512xf32>
    %33 = vector.extract_strided_slice %2 {offsets = [7, 0], sizes = [1, 512], strides = [1, 1]} : vector<8x512xf32> to vector<1x512xf32>
    %34 = vector.broadcast %33 : vector<1x512xf32> to vector<4x512xf32>
    %35 = arith.mulf %32, %34 : vector<4x512xf32>
    %36 = tpu.concatenate %7, %11, %15, %19, %1, %23, %27, %31, %35 in 0 : vector<4x512xf32>, vector<4x512xf32>, vector<4x512xf32>, vector<4x512xf32>, vector<4x512xf32>, vector<4x512xf32>, vector<4x512xf32>, vector<4x512xf32>, vector<4x512xf32> -> vector<36x512xf32>
    %cst = arith.constant dense<0.000000e+00> : vector<4x512xf32>
    %37 = tpu.matmul %3, %36, %cst {dimension_numbers = #tpu.dot_dimension_numbers<[1], [0], [0], [1], [0, 0, 1, 1], [], []>} : vector<4x36xf32>, vector<36x512xf32>, vector<4x512xf32> -> vector<4x512xf32>
    %c0_6 = arith.constant 0 : index
    %c0_7 = arith.constant 0 : index
    %38 = vector.load %arg4[%c0_6, %c0_7] : memref<4x1xf32, #tpu.memory_space<vmem>>, vector<4x1xf32>
    %39 = vector.broadcast %38 : vector<4x1xf32> to vector<4x512xf32>
    %40 = arith.addf %37, %39 : vector<4x512xf32>
    %cst_8 = arith.constant 0.000000e+00 : f32
    %41 = vector.broadcast %cst_8 : f32 to vector<4x512xf32>
    %42 = arith.maximumf %40, %41 : vector<4x512xf32>
    %c0_9 = arith.constant 0 : index
    %c0_10 = arith.constant 0 : index
    %43 = vector.load %arg5[%c0_9, %c0_10] : memref<4x36xf32, #tpu.memory_space<vmem>>, vector<4x36xf32>
    %c17_i32_11 = arith.constant 17 : i32
    %44 = tpu.dynamic_rotate %42 by %c17_i32_11 dim 1 : vector<4x512xf32>, i32 -> vector<4x512xf32>
    %45 = vector.extract_strided_slice %2 {offsets = [0, 0], sizes = [1, 512], strides = [1, 1]} : vector<8x512xf32> to vector<1x512xf32>
    %46 = vector.broadcast %45 : vector<1x512xf32> to vector<4x512xf32>
    %47 = arith.mulf %44, %46 : vector<4x512xf32>
    %c16_i32_12 = arith.constant 16 : i32
    %48 = tpu.dynamic_rotate %42 by %c16_i32_12 dim 1 : vector<4x512xf32>, i32 -> vector<4x512xf32>
    %49 = vector.extract_strided_slice %2 {offsets = [1, 0], sizes = [1, 512], strides = [1, 1]} : vector<8x512xf32> to vector<1x512xf32>
    %50 = vector.broadcast %49 : vector<1x512xf32> to vector<4x512xf32>
    %51 = arith.mulf %48, %50 : vector<4x512xf32>
    %c15_i32_13 = arith.constant 15 : i32
    %52 = tpu.dynamic_rotate %42 by %c15_i32_13 dim 1 : vector<4x512xf32>, i32 -> vector<4x512xf32>
    %53 = vector.extract_strided_slice %2 {offsets = [2, 0], sizes = [1, 512], strides = [1, 1]} : vector<8x512xf32> to vector<1x512xf32>
    %54 = vector.broadcast %53 : vector<1x512xf32> to vector<4x512xf32>
    %55 = arith.mulf %52, %54 : vector<4x512xf32>
    %c1_i32_14 = arith.constant 1 : i32
    %56 = tpu.dynamic_rotate %42 by %c1_i32_14 dim 1 : vector<4x512xf32>, i32 -> vector<4x512xf32>
    %57 = vector.extract_strided_slice %2 {offsets = [3, 0], sizes = [1, 512], strides = [1, 1]} : vector<8x512xf32> to vector<1x512xf32>
    %58 = vector.broadcast %57 : vector<1x512xf32> to vector<4x512xf32>
    %59 = arith.mulf %56, %58 : vector<4x512xf32>
    %c511_i32_15 = arith.constant 511 : i32
    %60 = tpu.dynamic_rotate %42 by %c511_i32_15 dim 1 : vector<4x512xf32>, i32 -> vector<4x512xf32>
    %61 = vector.extract_strided_slice %2 {offsets = [4, 0], sizes = [1, 512], strides = [1, 1]} : vector<8x512xf32> to vector<1x512xf32>
    %62 = vector.broadcast %61 : vector<1x512xf32> to vector<4x512xf32>
    %63 = arith.mulf %60, %62 : vector<4x512xf32>
    %c497_i32_16 = arith.constant 497 : i32
    %64 = tpu.dynamic_rotate %42 by %c497_i32_16 dim 1 : vector<4x512xf32>, i32 -> vector<4x512xf32>
    %65 = vector.extract_strided_slice %2 {offsets = [5, 0], sizes = [1, 512], strides = [1, 1]} : vector<8x512xf32> to vector<1x512xf32>
    %66 = vector.broadcast %65 : vector<1x512xf32> to vector<4x512xf32>
    %67 = arith.mulf %64, %66 : vector<4x512xf32>
    %c496_i32_17 = arith.constant 496 : i32
    %68 = tpu.dynamic_rotate %42 by %c496_i32_17 dim 1 : vector<4x512xf32>, i32 -> vector<4x512xf32>
    %69 = vector.extract_strided_slice %2 {offsets = [6, 0], sizes = [1, 512], strides = [1, 1]} : vector<8x512xf32> to vector<1x512xf32>
    %70 = vector.broadcast %69 : vector<1x512xf32> to vector<4x512xf32>
    %71 = arith.mulf %68, %70 : vector<4x512xf32>
    %c495_i32_18 = arith.constant 495 : i32
    %72 = tpu.dynamic_rotate %42 by %c495_i32_18 dim 1 : vector<4x512xf32>, i32 -> vector<4x512xf32>
    %73 = vector.extract_strided_slice %2 {offsets = [7, 0], sizes = [1, 512], strides = [1, 1]} : vector<8x512xf32> to vector<1x512xf32>
    %74 = vector.broadcast %73 : vector<1x512xf32> to vector<4x512xf32>
    %75 = arith.mulf %72, %74 : vector<4x512xf32>
    %76 = tpu.concatenate %47, %51, %55, %59, %42, %63, %67, %71, %75 in 0 : vector<4x512xf32>, vector<4x512xf32>, vector<4x512xf32>, vector<4x512xf32>, vector<4x512xf32>, vector<4x512xf32>, vector<4x512xf32>, vector<4x512xf32>, vector<4x512xf32> -> vector<36x512xf32>
    %cst_19 = arith.constant dense<0.000000e+00> : vector<4x512xf32>
    %77 = tpu.matmul %43, %76, %cst_19 {dimension_numbers = #tpu.dot_dimension_numbers<[1], [0], [0], [1], [0, 0, 1, 1], [], []>} : vector<4x36xf32>, vector<36x512xf32>, vector<4x512xf32> -> vector<4x512xf32>
    %c0_20 = arith.constant 0 : index
    %c0_21 = arith.constant 0 : index
    %78 = vector.load %arg6[%c0_20, %c0_21] : memref<4x1xf32, #tpu.memory_space<vmem>>, vector<4x1xf32>
    %79 = vector.broadcast %78 : vector<4x1xf32> to vector<4x512xf32>
    %80 = arith.addf %77, %79 : vector<4x512xf32>
    %81 = arith.addf %80, %1 : vector<4x512xf32>
    %cst_22 = arith.constant 0.000000e+00 : f32
    %82 = vector.broadcast %cst_22 : f32 to vector<4x512xf32>
    %83 = arith.maximumf %81, %82 : vector<4x512xf32>
    %c0_23 = arith.constant 0 : index
    %c0_24 = arith.constant 0 : index
    %c0_25 = arith.constant 0 : index
    %84 = vector.load %arg7[%c0_23, %c0_24, %c0_25] : memref<1x4x512xf32, #tpu.memory_space<vmem>>, vector<1x4x512xf32>
    %85 = vector.shape_cast %84 : vector<1x4x512xf32> to vector<4x512xf32>
    %86 = vector.shape_cast %83 : vector<4x512xf32> to vector<1x4x512xf32>
    tpu.vector_store %arg7[%c0_23, %c0_24, %c0_25], %86 {strides = array<i32>} : memref<1x4x512xf32, #tpu.memory_space<vmem>>, vector<1x4x512xf32>,
    return
  }
  func.func @transform_0(%arg0: i32) -> (i32, i32, i32) {
    %c0_i32 = arith.constant 0 : i32
    %c0_i32_0 = arith.constant 0 : i32
    %c0_i32_1 = arith.constant 0 : i32
    return %arg0, %c0_i32, %c0_i32_0 : i32, i32, i32
  }
  func.func @transform_1(%arg0: i32) -> (i32, i32) {
    %c0_i32 = arith.constant 0 : i32
    %c0_i32_0 = arith.constant 0 : i32
    %c0_i32_1 = arith.constant 0 : i32
    return %c0_i32, %c0_i32_0 : i32, i32
  }
  func.func @transform_2(%arg0: i32) -> (i32, i32) {
    %c0_i32 = arith.constant 0 : i32
    %c0_i32_0 = arith.constant 0 : i32
    %c0_i32_1 = arith.constant 0 : i32
    return %c0_i32, %c0_i32_0 : i32, i32
  }
  func.func @transform_3(%arg0: i32) -> (i32, i32) {
    %c0_i32 = arith.constant 0 : i32
    %c0_i32_0 = arith.constant 0 : i32
    %c0_i32_1 = arith.constant 0 : i32
    return %c0_i32, %c0_i32_0 : i32, i32
  }
  func.func @transform_4(%arg0: i32) -> (i32, i32) {
    %c0_i32 = arith.constant 0 : i32
    %c0_i32_0 = arith.constant 0 : i32
    %c0_i32_1 = arith.constant 0 : i32
    return %c0_i32, %c0_i32_0 : i32, i32
  }
  func.func @transform_5(%arg0: i32) -> (i32, i32) {
    %c0_i32 = arith.constant 0 : i32
    %c0_i32_0 = arith.constant 0 : i32
    %c0_i32_1 = arith.constant 0 : i32
    return %c0_i32, %c0_i32_0 : i32, i32
  }
  func.func @transform_6(%arg0: i32) -> (i32, i32, i32) {
    %c0_i32 = arith.constant 0 : i32
    %c0_i32_0 = arith.constant 0 : i32
    %c0_i32_1 = arith.constant 0 : i32
    return %arg0, %c0_i32, %c0_i32_0 : i32, i32, i32
  }
}

</mosaic_0001>

<llo_original>
// kernel: tpu_custom_call.1
$region0: #{tpu_custom_call.1}
  #allocation0 [shape = 'u32[]', space=smem, size = 0x4, offset = 0x4, fixed_abs, tag = 'smem constant byte address 0x4 - core index']
  #allocation1 [shape = 'u32[144,128]{1,0:T(1,128)}', space=vmem, size = 0x12000, scoped, tag = 'internal scratch']
  %s0 = inlined_call_operand.hbm [shape: f32[1,4,512], index: 0, kind: input, shape index: {}]
  %s1 = inlined_call_operand.hbm [shape: f32[8,512], index: 1, kind: input, shape index: {}]
  %s2 = inlined_call_operand.vmem [shape: f32[4,36], index: 2, kind: input, shape index: {}]
  %s3 = inlined_call_operand.vmem [shape: f32[4,1], index: 3, kind: input, shape index: {}]
  %s4 = inlined_call_operand.vmem [shape: f32[4,36], index: 4, kind: input, shape index: {}]
  %s5 = inlined_call_operand.vmem [shape: f32[4,1], index: 5, kind: input, shape index: {}]
  %s6 = inlined_call_operand.hbm [shape: f32[1,4,512], index: 6, kind: output, shape index: {}]
  %s7 = sld [smem:[#allocation0]]
  $region42: #{tpu_custom_call.1} parent=0
    _
  %s9 = ssub.s32 1, %s7
  %s10 = scalar_select 0, %s9, %s7
  $region1: #{tpu_custom_call.1} parent=0
    #allocation2 [shape = 'u8[8192]{0}', space=vmem, size = 0x2000, scoped, tag = 'input window, operand 0, single buffered']
    #allocation3 [shape = 's32[1]{0}', space=sflag, size = 0x4, scoped, tag = 'scoped memory for tpu_custom_call.1']
    #allocation4 [shape = 's32[1]{0}', space=sflag, size = 0x4, scoped, tag = 'scoped memory for tpu_custom_call.1']
    #allocation5 [shape = 'u8[16384]{0}', space=vmem, size = 0x4000, scoped, tag = 'input window, operand 1, single buffered']
    #allocation6 [shape = 's32[1]{0}', space=sflag, size = 0x4, scoped, tag = 'scoped memory for tpu_custom_call.1']
    #allocation7 [shape = 'u8[8192]{0}', space=vmem, size = 0x2000, scoped, tag = 'output window, operand 0, single buffered']
    %11 = vsyncpa [#allocation3], 0
    %12 = vsyncpa [#allocation6], 0
    %13 = vsyncpa [#allocation4], 0
    // Predicated region
    $region2: #{tpu_custom_call.1} parent=1 // pred_check
      _
    $region3: #{tpu_custom_call.1} parent=1 // pred_check_branch
      %15 = sbr.rel (0) target = $region5
    $region4: #{tpu_custom_call.1} parent=1 // pred_region
      %s17 = ssub.s32 256, 256
      %18 = vsyncadd [#allocation3], %s17
      %s20 = sshll.u32 [#allocation2], 4
      %s21 = int_to_ptr.vmem [resolvable:$true] %s20
      %23 = dma.hbm_to_vmem [thread:$0]  %s0, 256, %s21, [#allocation3]
    $region5: #{tpu_custom_call.1} parent=1 // pred_fallthru
      _
    // Predicated region
    $region6: #{tpu_custom_call.1} parent=1 // pred_check
      _
    $region7: #{tpu_custom_call.1} parent=1 // pred_check_branch
      %25 = sbr.rel (0) target = $region9
    $region8: #{tpu_custom_call.1} parent=1 // pred_region
      %s27 = ssub.s32 512, 512
      %28 = vsyncadd [#allocation6], %s27
      %s30 = sshll.u32 [#allocation5], 4
      %s31 = int_to_ptr.vmem [resolvable:$true] %s30
      %33 = dma.hbm_to_vmem [thread:$0]  %s1, 512, %s31, [#allocation6]
    $region9: #{tpu_custom_call.1} parent=1 // pred_fallthru
      _
    // Predicated region
    $region10: #{tpu_custom_call.1} parent=1 // pred_check
      _
    $region11: #{tpu_custom_call.1} parent=1 // pred_check_branch
      %35 = sbr.rel (0) target = $region13
    $region12: #{tpu_custom_call.1} parent=1 // pred_region
      _
    $region13: #{tpu_custom_call.1} parent=1 // pred_fallthru
      _
    // Predicated region
    $region14: #{tpu_custom_call.1} parent=1 // pred_check
      _
    $region15: #{tpu_custom_call.1} parent=1 // pred_check_branch
      %37 = sbr.rel (0) target = $region17
    $region16: #{tpu_custom_call.1} parent=1 // pred_region
      _
    $region17: #{tpu_custom_call.1} parent=1 // pred_fallthru
      _
    // Predicated region
    $region18: #{tpu_custom_call.1} parent=1 // pred_check
      _
    $region19: #{tpu_custom_call.1} parent=1 // pred_check_branch
      %39 = sbr.rel (0) target = $region21
    $region20: #{tpu_custom_call.1} parent=1 // pred_region
      _
    $region21: #{tpu_custom_call.1} parent=1 // pred_fallthru
      _
    // Predicated region
    $region22: #{tpu_custom_call.1} parent=1 // pred_check
      _
    $region23: #{tpu_custom_call.1} parent=1 // pred_check_branch
      %41 = sbr.rel (0) target = $region25
    $region24: #{tpu_custom_call.1} parent=1 // pred_region
      _
    $region25: #{tpu_custom_call.1} parent=1 // pred_fallthru
      _
    // Predicated region
    $region26: #{tpu_custom_call.1} parent=1 // pred_check
      _
    $region27: #{tpu_custom_call.1} parent=1 // pred_check_branch
      %43 = sbr.rel (0) target = $region29
    $region28: #{tpu_custom_call.1} parent=1 // pred_region
      %44 = dma.done [#allocation3], 256
    $region29: #{tpu_custom_call.1} parent=1 // pred_fallthru
      _
    // Predicated region
    $region30: #{tpu_custom_call.1} parent=1 // pred_check
      _
    $region31: #{tpu_custom_call.1} parent=1 // pred_check_branch
      %46 = sbr.rel (0) target = $region33
    $region32: #{tpu_custom_call.1} parent=1 // pred_region
      %47 = dma.done [#allocation6], 512
    $region33: #{tpu_custom_call.1} parent=1 // pred_fallthru
      _
    %v48 = vld [vmem:[#allocation2] sm:$0xff]
    %v49 = vld [vmem:[#allocation2 + $0x8] sm:$0xff]
    %v50 = vld [vmem:[#allocation5] sm:$0xff]
    %v51 = vld [vmem:[#allocation5 + $0x8] sm:$0xff]
    %v52 = vld [vmem:[#allocation5 + $0x10] sm:$0xff]
    %v53 = vld [vmem:[#allocation5 + $0x18] sm:$0xff]
    %v54 = vld [vmem:[%s2] sm:$0xf]
    %v57 = vcombine.high %v48, %v48
    %v58 = vcombine.high %v49, %v49
    %61 = vrot.lane.b32.xlu0 %v48, 17
    %v62 = vpop.permute.xlu0 %61
    %63 = vrot.lane.b32.xlu0 %v57, 17
    %v64 = vpop.permute.xlu0 %63
    %65 = vrot.lane.b32.xlu0 %v49, 17
    %v66 = vpop.permute.xlu0 %65
    %67 = vrot.lane.b32.xlu0 %v58, 17
    %v68 = vpop.permute.xlu0 %67
    %v69 = vlaneseq
    %v70 = vand.u32 %v69, 127
    %vm71 = vcmp.lt.s32.totalorder %v70, 17
    %v72 = vsel %vm71, %v66, %v68
    %v73 = vsel %vm71, %v64, %v66
    %v74 = vsel %vm71, %v62, %v64
    %v75 = vsel %vm71, %v68, %v62
    %v76 = vlaneseq
    %v77 = vshrl.u32 %v76, 7
    %v78 = vsub.s32 0, %v77
    %v79 = vrot.slane %v50, %v78
    %v80 = vlaneseq
    %v81 = vshrl.u32 %v80, 7
    %v82 = vsub.s32 0, %v81
    %v83 = vrot.slane %v51, %v82
    %v84 = vlaneseq
    %v85 = vshrl.u32 %v84, 7
    %v86 = vsub.s32 0, %v85
    %v87 = vrot.slane %v52, %v86
    %v88 = vlaneseq
    %v89 = vshrl.u32 %v88, 7
    %v90 = vsub.s32 0, %v89
    %v91 = vrot.slane %v53, %v90
    %v92 = vmul.f32 %v75, %v79
    %v93 = vmul.f32 %v74, %v83
    %v94 = vmul.f32 %v73, %v87
    %v95 = vmul.f32 %v72, %v91
    %96 = vrot.lane.b32.xlu0 %v48, 16
    %v97 = vpop.permute.xlu0 %96
    %98 = vrot.lane.b32.xlu0 %v57, 16
    %v99 = vpop.permute.xlu0 %98
    %100 = vrot.lane.b32.xlu0 %v49, 16
    %v101 = vpop.permute.xlu0 %100
    %102 = vrot.lane.b32.xlu0 %v58, 16
    %v103 = vpop.permute.xlu0 %102
    %vm104 = vcmp.lt.s32.totalorder %v70, 16
    %v105 = vsel %vm104, %v101, %v103
    %v106 = vsel %vm104, %v99, %v101
    %v107 = vsel %vm104, %v97, %v99
    %v108 = vsel %vm104, %v103, %v97
    %v109 = vlaneseq
    %v110 = vshrl.u32 %v109, 7
    %v111 = vsub.s32 1, %v110
    %v112 = vrot.slane %v50, %v111
    %v113 = vlaneseq
    %v114 = vshrl.u32 %v113, 7
    %v115 = vsub.s32 1, %v114
    %v116 = vrot.slane %v51, %v115
    %v117 = vlaneseq
    %v118 = vshrl.u32 %v117, 7
    %v119 = vsub.s32 1, %v118
    %v120 = vrot.slane %v52, %v119
    %v121 = vlaneseq
    %v122 = vshrl.u32 %v121, 7
    %v123 = vsub.s32 1, %v122
    %v124 = vrot.slane %v53, %v123
    %v125 = vmul.f32 %v108, %v112
    %v126 = vmul.f32 %v107, %v116
    %v127 = vmul.f32 %v106, %v120
    %v128 = vmul.f32 %v105, %v124
    %129 = vrot.lane.b32.xlu0 %v48, 15
    %v130 = vpop.permute.xlu0 %129
    %131 = vrot.lane.b32.xlu0 %v57, 15
    %v132 = vpop.permute.xlu0 %131
    %133 = vrot.lane.b32.xlu0 %v49, 15
    %v134 = vpop.permute.xlu0 %133
    %135 = vrot.lane.b32.xlu0 %v58, 15
    %v136 = vpop.permute.xlu0 %135
    %vm137 = vcmp.lt.s32.totalorder %v70, 15
    %v138 = vsel %vm137, %v134, %v136
    %v139 = vsel %vm137, %v132, %v134
    %v140 = vsel %vm137, %v130, %v132
    %v141 = vsel %vm137, %v136, %v130
    %v142 = vlaneseq
    %v143 = vshrl.u32 %v142, 7
    %v144 = vsub.s32 2, %v143
    %v145 = vrot.slane %v50, %v144
    %v146 = vlaneseq
    %v147 = vshrl.u32 %v146, 7
    %v148 = vsub.s32 2, %v147
    %v149 = vrot.slane %v51, %v148
    %v150 = vlaneseq
    %v151 = vshrl.u32 %v150, 7
    %v152 = vsub.s32 2, %v151
    %v153 = vrot.slane %v52, %v152
    %v154 = vlaneseq
    %v155 = vshrl.u32 %v154, 7
    %v156 = vsub.s32 2, %v155
    %v157 = vrot.slane %v53, %v156
    %v158 = vmul.f32 %v141, %v145
    %v159 = vmul.f32 %v140, %v149
    %v160 = vmul.f32 %v139, %v153
    %v161 = vmul.f32 %v138, %v157
    %162 = vrot.lane.b32.xlu0 %v48, 1
    %v163 = vpop.permute.xlu0 %162
    %164 = vrot.lane.b32.xlu0 %v57, 1
    %v165 = vpop.permute.xlu0 %164
    %166 = vrot.lane.b32.xlu0 %v49, 1
    %v167 = vpop.permute.xlu0 %166
    %168 = vrot.lane.b32.xlu0 %v58, 1
    %v169 = vpop.permute.xlu0 %168
    %vm170 = vcmp.lt.s32.totalorder %v70, 1
    %v171 = vsel %vm170, %v167, %v169
    %v172 = vsel %vm170, %v165, %v167
    %v173 = vsel %vm170, %v163, %v165
    %v174 = vsel %vm170, %v169, %v163
    %v175 = vlaneseq
    %v176 = vshrl.u32 %v175, 7
    %v177 = vsub.s32 3, %v176
    %v178 = vrot.slane %v50, %v177
    %v179 = vlaneseq
    %v180 = vshrl.u32 %v179, 7
    %v181 = vsub.s32 3, %v180
    %v182 = vrot.slane %v51, %v181
    %v183 = vlaneseq
    %v184 = vshrl.u32 %v183, 7
    %v185 = vsub.s32 3, %v184
    %v186 = vrot.slane %v52, %v185
    %v187 = vlaneseq
    %v188 = vshrl.u32 %v187, 7
    %v189 = vsub.s32 3, %v188
    %v190 = vrot.slane %v53, %v189
    %v191 = vmul.f32 %v174, %v178
    %v192 = vmul.f32 %v173, %v182
    %v193 = vmul.f32 %v172, %v186
    %v194 = vmul.f32 %v171, %v190
    %195 = vrot.lane.b32.xlu0 %v48, 127
    %v196 = vpop.permute.xlu0 %195
    %197 = vrot.lane.b32.xlu0 %v57, 127
    %v198 = vpop.permute.xlu0 %197
    %199 = vrot.lane.b32.xlu0 %v49, 127
    %v200 = vpop.permute.xlu0 %199
    %201 = vrot.lane.b32.xlu0 %v58, 127
    %v202 = vpop.permute.xlu0 %201
    %vm203 = vcmp.lt.s32.totalorder %v70, 127
    %v204 = vsel %vm203, %v200, %v202
    %v205 = vsel %vm203, %v198, %v200
    %v206 = vsel %vm203, %v196, %v198
    %v207 = vsel %vm203, %v202, %v196
    %v208 = vlaneseq
    %v209 = vshrl.u32 %v208, 7
    %v210 = vsub.s32 4, %v209
    %v211 = vrot.slane %v50, %v210
    %v212 = vlaneseq
    %v213 = vshrl.u32 %v212, 7
    %v214 = vsub.s32 4, %v213
    %v215 = vrot.slane %v51, %v214
    %v216 = vlaneseq
    %v217 = vshrl.u32 %v216, 7
    %v218 = vsub.s32 4, %v217
    %v219 = vrot.slane %v52, %v218
    %v220 = vlaneseq
    %v221 = vshrl.u32 %v220, 7
    %v222 = vsub.s32 4, %v221
    %v223 = vrot.slane %v53, %v222
    %v224 = vmul.f32 %v206, %v211
    %v225 = vmul.f32 %v205, %v215
    %v226 = vmul.f32 %v204, %v219
    %v227 = vmul.f32 %v207, %v223
    %228 = vrot.lane.b32.xlu0 %v48, 113
    %v229 = vpop.permute.xlu0 %228
    %230 = vrot.lane.b32.xlu0 %v57, 113
    %v231 = vpop.permute.xlu0 %230
    %232 = vrot.lane.b32.xlu0 %v49, 113
    %v233 = vpop.permute.xlu0 %232
    %234 = vrot.lane.b32.xlu0 %v58, 113
    %v235 = vpop.permute.xlu0 %234
    %vm236 = vcmp.lt.s32.totalorder %v70, 113
    %v237 = vsel %vm236, %v233, %v235
    %v238 = vsel %vm236, %v231, %v233
    %v239 = vsel %vm236, %v229, %v231
    %v240 = vsel %vm236, %v235, %v229
    %v241 = vlaneseq
    %v242 = vshrl.u32 %v241, 7
    %v243 = vsub.s32 5, %v242
    %v244 = vrot.slane %v50, %v243
    %v245 = vlaneseq
    %v246 = vshrl.u32 %v245, 7
    %v247 = vsub.s32 5, %v246
    %v248 = vrot.slane %v51, %v247
    %v249 = vlaneseq
    %v250 = vshrl.u32 %v249, 7
    %v251 = vsub.s32 5, %v250
    %v252 = vrot.slane %v52, %v251
    %v253 = vlaneseq
    %v254 = vshrl.u32 %v253, 7
    %v255 = vsub.s32 5, %v254
    %v256 = vrot.slane %v53, %v255
    %v257 = vmul.f32 %v239, %v244
    %v258 = vmul.f32 %v238, %v248
    %v259 = vmul.f32 %v237, %v252
    %v260 = vmul.f32 %v240, %v256
    %261 = vrot.lane.b32.xlu0 %v48, 112
    %v262 = vpop.permute.xlu0 %261
    %263 = vrot.lane.b32.xlu0 %v57, 112
    %v264 = vpop.permute.xlu0 %263
    %265 = vrot.lane.b32.xlu0 %v49, 112
    %v266 = vpop.permute.xlu0 %265
    %267 = vrot.lane.b32.xlu0 %v58, 112
    %v268 = vpop.permute.xlu0 %267
    %vm269 = vcmp.lt.s32.totalorder %v70, 112
    %v270 = vsel %vm269, %v266, %v268
    %v271 = vsel %vm269, %v264, %v266
    %v272 = vsel %vm269, %v262, %v264
    %v273 = vsel %vm269, %v268, %v262
    %v274 = vlaneseq
    %v275 = vshrl.u32 %v274, 7
    %v276 = vsub.s32 6, %v275
    %v277 = vrot.slane %v50, %v276
    %v278 = vlaneseq
    %v279 = vshrl.u32 %v278, 7
    %v280 = vsub.s32 6, %v279
    %v281 = vrot.slane %v51, %v280
    %v282 = vlaneseq
    %v283 = vshrl.u32 %v282, 7
    %v284 = vsub.s32 6, %v283
    %v285 = vrot.slane %v52, %v284
    %v286 = vlaneseq
    %v287 = vshrl.u32 %v286, 7
    %v288 = vsub.s32 6, %v287
    %v289 = vrot.slane %v53, %v288
    %v290 = vmul.f32 %v272, %v277
    %v291 = vmul.f32 %v271, %v281
    %v292 = vmul.f32 %v270, %v285
    %v293 = vmul.f32 %v273, %v289
    %294 = vrot.lane.b32.xlu0 %v48, 111
    %v295 = vpop.permute.xlu0 %294
    %296 = vrot.lane.b32.xlu0 %v57, 111
    %v297 = vpop.permute.xlu0 %296
    %298 = vrot.lane.b32.xlu0 %v49, 111
    %v299 = vpop.permute.xlu0 %298
    %300 = vrot.lane.b32.xlu0 %v58, 111
    %v301 = vpop.permute.xlu0 %300
    %vm302 = vcmp.lt.s32.totalorder %v70, 111
    %v303 = vsel %vm302, %v299, %v301
    %v304 = vsel %vm302, %v297, %v299
    %v305 = vsel %vm302, %v295, %v297
    %v306 = vsel %vm302, %v301, %v295
    %v307 = vlaneseq
    %v308 = vshrl.u32 %v307, 7
    %v309 = vsub.s32 7, %v308
    %v310 = vrot.slane %v50, %v309
    %v311 = vlaneseq
    %v312 = vshrl.u32 %v311, 7
    %v313 = vsub.s32 7, %v312
    %v314 = vrot.slane %v51, %v313
    %v315 = vlaneseq
    %v316 = vshrl.u32 %v315, 7
    %v317 = vsub.s32 7, %v316
    %v318 = vrot.slane %v52, %v317
    %v319 = vlaneseq
    %v320 = vshrl.u32 %v319, 7
    %v321 = vsub.s32 7, %v320
    %v322 = vrot.slane %v53, %v321
    %v323 = vmul.f32 %v305, %v310
    %v324 = vmul.f32 %v304, %v314
    %v325 = vmul.f32 %v303, %v318
    %v326 = vmul.f32 %v306, %v322
    %v331 = vrot.slane %v125, 4
    %v332 = vrot.slane %v126, 4
    %v333 = vrot.slane %v127, 4
    %v334 = vrot.slane %v128, 4
    %v343 = vrot.slane %v191, 4
    %v344 = vrot.slane %v192, 4
    %v345 = vrot.slane %v193, 4
    %v346 = vrot.slane %v194, 4
    %v355 = vrot.slane %v224, 4
    %v356 = vrot.slane %v225, 4
    %v357 = vrot.slane %v226, 4
    %v358 = vrot.slane %v227, 4
    %v367 = vrot.slane %v290, 4
    %v368 = vrot.slane %v291, 4
    %v369 = vrot.slane %v292, 4
    %v370 = vrot.slane %v293, 4
    %vm375 = vcmask 1043456
    %v376 = vsel %vm375, %v92, %v331
    %v377 = vsel %vm375, %v93, %v332
    %v378 = vsel %vm375, %v94, %v333
    %v379 = vsel %vm375, %v95, %v334
    %v380 = vsel %vm375, %v158, %v343
    %v381 = vsel %vm375, %v159, %v344
    %v382 = vsel %vm375, %v160, %v345
    %v383 = vsel %vm375, %v161, %v346
    %v384 = vsel %vm375, %v48, %v355
    %v385 = vsel %vm375, %v57, %v356
    %v386 = vsel %vm375, %v49, %v357
    %v387 = vsel %vm375, %v58, %v358
    %v388 = vsel %vm375, %v257, %v367
    %v389 = vsel %vm375, %v258, %v368
    %v390 = vsel %vm375, %v259, %v369
    %v391 = vsel %vm375, %v260, %v370
    %v392 = vld [vmem:[%s3] sm:$0xf]
    %394 = vset.pattern.permute.xlu0 0
    %395 = vperm.xlu0 %394, %v392
    %v396 = vpop.permute.xlu0 %395
    %vm398 = vcmask 293888
    %v400 = vsel %vm398, %v54, 0
    %v403 = vsel %vm375, %v323, 0
    %v406 = vsel %vm375, %v324, 0
    %v409 = vsel %vm375, %v325, 0
    %v412 = vsel %vm375, %v326, 0
    %414 = vmatprep.subr.mxu0 %v377
    %415 = vmatpush1.msra.mxu0 %v376
    %416 = vmatprep.subr.mxu0 %v381
    %417 = vmatpush1.msra.mxu0 %v380
    %418 = vmatprep.subr.mxu0 %v385
    %419 = vmatpush1.msra.mxu0 %v384
    %420 = vmatprep.subr.mxu0 %v389
    %421 = vmatpush1.msra.mxu0 %v388
    %422 = vmatprep.subr.mxu0 %v406
    %423 = vmatpush1.msra.mxu0 %v403
    %424 = vmatprep.subr.mxu0 0.0
    %425 = vmatpush1.msra.mxu0 0.0
    %426 = vmatprep.subr.mxu0 0.0
    %427 = vmatpush1.msra.mxu0 0.0
    %428 = vmatprep.subr.mxu0 0.0
    %429 = vmatpush1.msra.mxu0 0.0
    %430 = vmatprep.subr.mxu0 0.0
    %431 = vmatpush1.msra.mxu0 0.0
    %432 = vmatprep.subr.mxu0 0.0
    %433 = vmatpush1.msra.mxu0 0.0
    %434 = vmatprep.subr.mxu0 0.0
    %435 = vmatpush1.msra.mxu0 0.0
    %436 = vmatprep.subr.mxu0 0.0
    %437 = vmatpush1.msra.mxu0 0.0
    %438 = vmatprep.subr.mxu0 0.0
    %439 = vmatpush1.msra.mxu0 0.0
    %440 = vmatprep.subr.mxu0 0.0
    %441 = vmatpush1.msra.mxu0 0.0
    %442 = vmatprep.subr.mxu0 0.0
    %443 = vmatpush1.msra.mxu0 0.0
    %444 = vmatprep.subr.mxu0 0.0
    %445 = vmatpush1.msra.mxu0 0.0
    %446 = vmatprep.subr.mxu0 0.0
    %447 = vmatpush1.msra.mxu0 0.0
    %448 = vmatprep.subr.mxu0 0.0
    %449 = vmatpush1.msra.mxu0 0.0
    %450 = vmatprep.subr.mxu0 0.0
    %451 = vmatpush1.msra.mxu0 0.0
    %452 = vmatprep.subr.mxu0 0.0
    %453 = vmatpush1.msra.mxu0 0.0
    %454 = vmatprep.subr.mxu0 0.0
    %455 = vmatpush1.msra.mxu0 0.0
    %456 = vmatprep.subr.mxu0 0.0
    %457 = vmatpush1.msra.mxu0 0.0
    %458 = vmatprep.subr.mxu0 0.0
    %459 = vmatpush1.msra.mxu0 0.0
    %460 = vmatprep.subr.mxu0 0.0
    %461 = vmatpush1.msra.mxu0 0.0
    %462 = vmatprep.subr.mxu0 0.0
    %463 = vmatpush1.msra.mxu0 0.0
    %464 = vmatprep.subr.mxu0 0.0
    %465 = vmatpush1.msra.mxu0 0.0
    %466 = vmatprep.subr.mxu0 0.0
    %467 = vmatpush1.msra.mxu0 0.0
    %468 = vmatprep.subr.mxu0 0.0
    %469 = vmatpush1.msra.mxu0 0.0
    %470 = vmatprep.subr.mxu0 0.0
    %471 = vmatpush1.msra.mxu0 0.0
    %472 = vmatprep.subr.mxu0 0.0
    %473 = vmatpush1.msra.mxu0 0.0
    %474 = vmatprep.subr.mxu0 0.0
    %475 = vmatpush1.msra.mxu0 0.0
    %476 = vmatprep.subr.mxu0 0.0
    %477 = vmatpush1.msra.mxu0 0.0
    %478 = vmatprep.mubr.f32.mxu0 0.0
    %479 = vmatmul.mubr.f32.gmra.mrb[0].mxu0 %v400
    %v480 = vpop.f32.mrb[0].mxu0
    %v481 = vadd.f32 %v396, %v480
    %v482 = vpop.f32.mrb[0].mxu0
    %v483 = vadd.f32 %v396, %v482
    %484 = vdwg.mxu0
    %485 = vmatprep.subr.mxu0 %v379
    %486 = vmatpush1.msra.mxu0 %v378
    %487 = vmatprep.subr.mxu0 %v383
    %488 = vmatpush1.msra.mxu0 %v382
    %489 = vmatprep.subr.mxu0 %v387
    %490 = vmatpush1.msra.mxu0 %v386
    %491 = vmatprep.subr.mxu0 %v391
    %492 = vmatpush1.msra.mxu0 %v390
    %493 = vmatprep.subr.mxu0 %v412
    %494 = vmatpush1.msra.mxu0 %v409
    %495 = vmatprep.subr.mxu0 0.0
    %496 = vmatpush1.msra.mxu0 0.0
    %497 = vmatprep.subr.mxu0 0.0
    %498 = vmatpush1.msra.mxu0 0.0
    %499 = vmatprep.subr.mxu0 0.0
    %500 = vmatpush1.msra.mxu0 0.0
    %501 = vmatprep.subr.mxu0 0.0
    %502 = vmatpush1.msra.mxu0 0.0
    %503 = vmatprep.subr.mxu0 0.0
    %504 = vmatpush1.msra.mxu0 0.0
    %505 = vmatprep.subr.mxu0 0.0
    %506 = vmatpush1.msra.mxu0 0.0
    %507 = vmatprep.subr.mxu0 0.0
    %508 = vmatpush1.msra.mxu0 0.0
    %509 = vmatprep.subr.mxu0 0.0
    %510 = vmatpush1.msra.mxu0 0.0
    %511 = vmatprep.subr.mxu0 0.0
    %512 = vmatpush1.msra.mxu0 0.0
    %513 = vmatprep.subr.mxu0 0.0
    %514 = vmatpush1.msra.mxu0 0.0
    %515 = vmatprep.subr.mxu0 0.0
    %516 = vmatpush1.msra.mxu0 0.0
    %517 = vmatprep.subr.mxu0 0.0
    %518 = vmatpush1.msra.mxu0 0.0
    %519 = vmatprep.subr.mxu0 0.0
    %520 = vmatpush1.msra.mxu0 0.0
    %521 = vmatprep.subr.mxu0 0.0
    %522 = vmatpush1.msra.mxu0 0.0
    %523 = vmatprep.subr.mxu0 0.0
    %524 = vmatpush1.msra.mxu0 0.0
    %525 = vmatprep.subr.mxu0 0.0
    %526 = vmatpush1.msra.mxu0 0.0
    %527 = vmatprep.subr.mxu0 0.0
    %528 = vmatpush1.msra.mxu0 0.0
    %529 = vmatprep.subr.mxu0 0.0
    %530 = vmatpush1.msra.mxu0 0.0
    %531 = vmatprep.subr.mxu0 0.0
    %532 = vmatpush1.msra.mxu0 0.0
    %533 = vmatprep.subr.mxu0 0.0
    %534 = vmatpush1.msra.mxu0 0.0
    %535 = vmatprep.subr.mxu0 0.0
    %536 = vmatpush1.msra.mxu0 0.0
    %537 = vmatprep.subr.mxu0 0.0
    %538 = vmatpush1.msra.mxu0 0.0
    %539 = vmatprep.subr.mxu0 0.0
    %540 = vmatpush1.msra.mxu0 0.0
    %541 = vmatprep.subr.mxu0 0.0
    %542 = vmatpush1.msra.mxu0 0.0
    %543 = vmatprep.subr.mxu0 0.0
    %544 = vmatpush1.msra.mxu0 0.0
    %545 = vmatprep.subr.mxu0 0.0
    %546 = vmatpush1.msra.mxu0 0.0
    %547 = vmatprep.subr.mxu0 0.0
    %548 = vmatpush1.msra.mxu0 0.0
    %549 = vmatprep.mubr.f32.mxu0 0.0
    %550 = vmatmul.mubr.f32.gmra.mrb[0].mxu0 %v400
    %v551 = vpop.f32.mrb[0].mxu0
    %v552 = vadd.f32 %v396, %v551
    %v553 = vpop.f32.mrb[0].mxu0
    %v554 = vadd.f32 %v396, %v553
    %555 = vdwg.mxu0
    %v556 = vmax.f32 %v481, 0.0
    %v557 = vmax.f32 %v483, 0.0
    %v558 = vmax.f32 %v552, 0.0
    %v559 = vmax.f32 %v554, 0.0
    %v560 = vld [vmem:[%s4] sm:$0xf]
    %561 = vrot.lane.b32.xlu0 %v556, 17
    %v562 = vpop.permute.xlu0 %561
    %563 = vrot.lane.b32.xlu0 %v557, 17
    %v564 = vpop.permute.xlu0 %563
    %565 = vrot.lane.b32.xlu0 %v558, 17
    %v566 = vpop.permute.xlu0 %565
    %567 = vrot.lane.b32.xlu0 %v559, 17
    %v568 = vpop.permute.xlu0 %567
    %v569 = vsel %vm71, %v566, %v568
    %v570 = vsel %vm71, %v564, %v566
    %v571 = vsel %vm71, %v562, %v564
    %v572 = vsel %vm71, %v568, %v562
    %v573 = vmul.f32 %v572, %v79
    %v574 = vmul.f32 %v571, %v83
    %v575 = vmul.f32 %v570, %v87
    %v576 = vmul.f32 %v569, %v91
    %577 = vrot.lane.b32.xlu0 %v556, 16
    %v578 = vpop.permute.xlu0 %577
    %579 = vrot.lane.b32.xlu0 %v557, 16
    %v580 = vpop.permute.xlu0 %579
    %581 = vrot.lane.b32.xlu0 %v558, 16
    %v582 = vpop.permute.xlu0 %581
    %583 = vrot.lane.b32.xlu0 %v559, 16
    %v584 = vpop.permute.xlu0 %583
    %v585 = vsel %vm104, %v582, %v584
    %v586 = vsel %vm104, %v580, %v582
    %v587 = vsel %vm104, %v578, %v580
    %v588 = vsel %vm104, %v584, %v578
    %v589 = vmul.f32 %v588, %v112
    %v590 = vmul.f32 %v587, %v116
    %v591 = vmul.f32 %v586, %v120
    %v592 = vmul.f32 %v585, %v124
    %593 = vrot.lane.b32.xlu0 %v556, 15
    %v594 = vpop.permute.xlu0 %593
    %595 = vrot.lane.b32.xlu0 %v557, 15
    %v596 = vpop.permute.xlu0 %595
    %597 = vrot.lane.b32.xlu0 %v558, 15
    %v598 = vpop.permute.xlu0 %597
    %599 = vrot.lane.b32.xlu0 %v559, 15
    %v600 = vpop.permute.xlu0 %599
    %v601 = vsel %vm137, %v598, %v600
    %v602 = vsel %vm137, %v596, %v598
    %v603 = vsel %vm137, %v594, %v596
    %v604 = vsel %vm137, %v600, %v594
    %v605 = vmul.f32 %v604, %v145
    %v606 = vmul.f32 %v603, %v149
    %v607 = vmul.f32 %v602, %v153
    %v608 = vmul.f32 %v601, %v157
    %609 = vrot.lane.b32.xlu0 %v556, 1
    %v610 = vpop.permute.xlu0 %609
    %611 = vrot.lane.b32.xlu0 %v557, 1
    %v612 = vpop.permute.xlu0 %611
    %613 = vrot.lane.b32.xlu0 %v558, 1
    %v614 = vpop.permute.xlu0 %613
    %615 = vrot.lane.b32.xlu0 %v559, 1
    %v616 = vpop.permute.xlu0 %615
    %v617 = vsel %vm170, %v614, %v616
    %v618 = vsel %vm170, %v612, %v614
    %v619 = vsel %vm170, %v610, %v612
    %v620 = vsel %vm170, %v616, %v610
    %v621 = vmul.f32 %v620, %v178
    %v622 = vmul.f32 %v619, %v182
    %v623 = vmul.f32 %v618, %v186
    %v624 = vmul.f32 %v617, %v190
    %625 = vrot.lane.b32.xlu0 %v556, 127
    %v626 = vpop.permute.xlu0 %625
    %627 = vrot.lane.b32.xlu0 %v557, 127
    %v628 = vpop.permute.xlu0 %627
    %629 = vrot.lane.b32.xlu0 %v558, 127
    %v630 = vpop.permute.xlu0 %629
    %631 = vrot.lane.b32.xlu0 %v559, 127
    %v632 = vpop.permute.xlu0 %631
    %v633 = vsel %vm203, %v630, %v632
    %v634 = vsel %vm203, %v628, %v630
    %v635 = vsel %vm203, %v626, %v628
    %v636 = vsel %vm203, %v632, %v626
    %v637 = vmul.f32 %v635, %v211
    %v638 = vmul.f32 %v634, %v215
    %v639 = vmul.f32 %v633, %v219
    %v640 = vmul.f32 %v636, %v223
    %641 = vrot.lane.b32.xlu0 %v556, 113
    %v642 = vpop.permute.xlu0 %641
    %643 = vrot.lane.b32.xlu0 %v557, 113
    %v644 = vpop.permute.xlu0 %643
    %645 = vrot.lane.b32.xlu0 %v558, 113
    %v646 = vpop.permute.xlu0 %645
    %647 = vrot.lane.b32.xlu0 %v559, 113
    %v648 = vpop.permute.xlu0 %647
    %v649 = vsel %vm236, %v646, %v648
    %v650 = vsel %vm236, %v644, %v646
    %v651 = vsel %vm236, %v642, %v644
    %v652 = vsel %vm236, %v648, %v642
    %v653 = vmul.f32 %v651, %v244
    %v654 = vmul.f32 %v650, %v248
    %v655 = vmul.f32 %v649, %v252
    %v656 = vmul.f32 %v652, %v256
    %657 = vrot.lane.b32.xlu0 %v556, 112
    %v658 = vpop.permute.xlu0 %657
    %659 = vrot.lane.b32.xlu0 %v557, 112
    %v660 = vpop.permute.xlu0 %659
    %661 = vrot.lane.b32.xlu0 %v558, 112
    %v662 = vpop.permute.xlu0 %661
    %663 = vrot.lane.b32.xlu0 %v559, 112
    %v664 = vpop.permute.xlu0 %663
    %v665 = vsel %vm269, %v662, %v664
    %v666 = vsel %vm269, %v660, %v662
    %v667 = vsel %vm269, %v658, %v660
    %v668 = vsel %vm269, %v664, %v658
    %v669 = vmul.f32 %v667, %v277
    %v670 = vmul.f32 %v666, %v281
    %v671 = vmul.f32 %v665, %v285
    %v672 = vmul.f32 %v668, %v289
    %673 = vrot.lane.b32.xlu0 %v556, 111
    %v674 = vpop.permute.xlu0 %673
    %675 = vrot.lane.b32.xlu0 %v557, 111
    %v676 = vpop.permute.xlu0 %675
    %677 = vrot.lane.b32.xlu0 %v558, 111
    %v678 = vpop.permute.xlu0 %677
    %679 = vrot.lane.b32.xlu0 %v559, 111
    %v680 = vpop.permute.xlu0 %679
    %v681 = vsel %vm302, %v678, %v680
    %v682 = vsel %vm302, %v676, %v678
    %v683 = vsel %vm302, %v674, %v676
    %v684 = vsel %vm302, %v680, %v674
    %v685 = vmul.f32 %v683, %v310
    %v686 = vmul.f32 %v682, %v314
    %v687 = vmul.f32 %v681, %v318
    %v688 = vmul.f32 %v684, %v322
    %v693 = vrot.slane %v589, 4
    %v694 = vrot.slane %v590, 4
    %v695 = vrot.slane %v591, 4
    %v696 = vrot.slane %v592, 4
    %v705 = vrot.slane %v621, 4
    %v706 = vrot.slane %v622, 4
    %v707 = vrot.slane %v623, 4
    %v708 = vrot.slane %v624, 4
    %v717 = vrot.slane %v637, 4
    %v718 = vrot.slane %v638, 4
    %v719 = vrot.slane %v639, 4
    %v720 = vrot.slane %v640, 4
    %v729 = vrot.slane %v669, 4
    %v730 = vrot.slane %v670, 4
    %v731 = vrot.slane %v671, 4
    %v732 = vrot.slane %v672, 4
    %v737 = vsel %vm375, %v573, %v693
    %v738 = vsel %vm375, %v574, %v694
    %v739 = vsel %vm375, %v575, %v695
    %v740 = vsel %vm375, %v576, %v696
    %v741 = vsel %vm375, %v605, %v705
    %v742 = vsel %vm375, %v606, %v706
    %v743 = vsel %vm375, %v607, %v707
    %v744 = vsel %vm375, %v608, %v708
    %v745 = vsel %vm375, %v556, %v717
    %v746 = vsel %vm375, %v557, %v718
    %v747 = vsel %vm375, %v558, %v719
    %v748 = vsel %vm375, %v559, %v720
    %v749 = vsel %vm375, %v653, %v729
    %v750 = vsel %vm375, %v654, %v730
    %v751 = vsel %vm375, %v655, %v731
    %v752 = vsel %vm375, %v656, %v732
    %v753 = vld [vmem:[%s5] sm:$0xf]
    %755 = vset.pattern.permute.xlu0 0
    %756 = vperm.xlu0 %755, %v753
    %v757 = vpop.permute.xlu0 %756
    %v760 = vsel %vm398, %v560, 0
    %v763 = vsel %vm375, %v685, 0
    %v766 = vsel %vm375, %v686, 0
    %v769 = vsel %vm375, %v687, 0
    %v772 = vsel %vm375, %v688, 0
    %774 = vmatprep.subr.mxu0 %v738
    %775 = vmatpush1.msra.mxu0 %v737
    %776 = vmatprep.subr.mxu0 %v742
    %777 = vmatpush1.msra.mxu0 %v741
    %778 = vmatprep.subr.mxu0 %v746
    %779 = vmatpush1.msra.mxu0 %v745
    %780 = vmatprep.subr.mxu0 %v750
    %781 = vmatpush1.msra.mxu0 %v749
    %782 = vmatprep.subr.mxu0 %v766
    %783 = vmatpush1.msra.mxu0 %v763
    %784 = vmatprep.subr.mxu0 0.0
    %785 = vmatpush1.msra.mxu0 0.0
    %786 = vmatprep.subr.mxu0 0.0
    %787 = vmatpush1.msra.mxu0 0.0
    %788 = vmatprep.subr.mxu0 0.0
    %789 = vmatpush1.msra.mxu0 0.0
    %790 = vmatprep.subr.mxu0 0.0
    %791 = vmatpush1.msra.mxu0 0.0
    %792 = vmatprep.subr.mxu0 0.0
    %793 = vmatpush1.msra.mxu0 0.0
    %794 = vmatprep.subr.mxu0 0.0
    %795 = vmatpush1.msra.mxu0 0.0
    %796 = vmatprep.subr.mxu0 0.0
    %797 = vmatpush1.msra.mxu0 0.0
    %798 = vmatprep.subr.mxu0 0.0
    %799 = vmatpush1.msra.mxu0 0.0
    %800 = vmatprep.subr.mxu0 0.0
    %801 = vmatpush1.msra.mxu0 0.0
    %802 = vmatprep.subr.mxu0 0.0
    %803 = vmatpush1.msra.mxu0 0.0
    %804 = vmatprep.subr.mxu0 0.0
    %805 = vmatpush1.msra.mxu0 0.0
    %806 = vmatprep.subr.mxu0 0.0
    %807 = vmatpush1.msra.mxu0 0.0
    %808 = vmatprep.subr.mxu0 0.0
    %809 = vmatpush1.msra.mxu0 0.0
    %810 = vmatprep.subr.mxu0 0.0
    %811 = vmatpush1.msra.mxu0 0.0
    %812 = vmatprep.subr.mxu0 0.0
    %813 = vmatpush1.msra.mxu0 0.0
    %814 = vmatprep.subr.mxu0 0.0
    %815 = vmatpush1.msra.mxu0 0.0
    %816 = vmatprep.subr.mxu0 0.0
    %817 = vmatpush1.msra.mxu0 0.0
    %818 = vmatprep.subr.mxu0 0.0
    %819 = vmatpush1.msra.mxu0 0.0
    %820 = vmatprep.subr.mxu0 0.0
    %821 = vmatpush1.msra.mxu0 0.0
    %822 = vmatprep.subr.mxu0 0.0
    %823 = vmatpush1.msra.mxu0 0.0
    %824 = vmatprep.subr.mxu0 0.0
    %825 = vmatpush1.msra.mxu0 0.0
    %826 = vmatprep.subr.mxu0 0.0
    %827 = vmatpush1.msra.mxu0 0.0
    %828 = vmatprep.subr.mxu0 0.0
    %829 = vmatpush1.msra.mxu0 0.0
    %830 = vmatprep.subr.mxu0 0.0
    %831 = vmatpush1.msra.mxu0 0.0
    %832 = vmatprep.subr.mxu0 0.0
    %833 = vmatpush1.msra.mxu0 0.0
    %834 = vmatprep.subr.mxu0 0.0
    %835 = vmatpush1.msra.mxu0 0.0
    %836 = vmatprep.subr.mxu0 0.0
    %837 = vmatpush1.msra.mxu0 0.0
    %838 = vmatprep.mubr.f32.mxu0 0.0
    %839 = vmatmul.mubr.f32.gmra.mrb[0].mxu0 %v760
    %v840 = vpop.f32.mrb[0].mxu0
    %v841 = vadd.f32 %v757, %v840
    %v842 = vpop.f32.mrb[0].mxu0
    %v843 = vadd.f32 %v757, %v842
    %844 = vdwg.mxu0
    %845 = vmatprep.subr.mxu0 %v740
    %846 = vmatpush1.msra.mxu0 %v739
    %847 = vmatprep.subr.mxu0 %v744
    %848 = vmatpush1.msra.mxu0 %v743
    %849 = vmatprep.subr.mxu0 %v748
    %850 = vmatpush1.msra.mxu0 %v747
    %851 = vmatprep.subr.mxu0 %v752
    %852 = vmatpush1.msra.mxu0 %v751
    %853 = vmatprep.subr.mxu0 %v772
    %854 = vmatpush1.msra.mxu0 %v769
    %855 = vmatprep.subr.mxu0 0.0
    %856 = vmatpush1.msra.mxu0 0.0
    %857 = vmatprep.subr.mxu0 0.0
    %858 = vmatpush1.msra.mxu0 0.0
    %859 = vmatprep.subr.mxu0 0.0
    %860 = vmatpush1.msra.mxu0 0.0
    %861 = vmatprep.subr.mxu0 0.0
    %862 = vmatpush1.msra.mxu0 0.0
    %863 = vmatprep.subr.mxu0 0.0
    %864 = vmatpush1.msra.mxu0 0.0
    %865 = vmatprep.subr.mxu0 0.0
    %866 = vmatpush1.msra.mxu0 0.0
    %867 = vmatprep.subr.mxu0 0.0
    %868 = vmatpush1.msra.mxu0 0.0
    %869 = vmatprep.subr.mxu0 0.0
    %870 = vmatpush1.msra.mxu0 0.0
    %871 = vmatprep.subr.mxu0 0.0
    %872 = vmatpush1.msra.mxu0 0.0
    %873 = vmatprep.subr.mxu0 0.0
    %874 = vmatpush1.msra.mxu0 0.0
    %875 = vmatprep.subr.mxu0 0.0
    %876 = vmatpush1.msra.mxu0 0.0
    %877 = vmatprep.subr.mxu0 0.0
    %878 = vmatpush1.msra.mxu0 0.0
    %879 = vmatprep.subr.mxu0 0.0
    %880 = vmatpush1.msra.mxu0 0.0
    %881 = vmatprep.subr.mxu0 0.0
    %882 = vmatpush1.msra.mxu0 0.0
    %883 = vmatprep.subr.mxu0 0.0
    %884 = vmatpush1.msra.mxu0 0.0
    %885 = vmatprep.subr.mxu0 0.0
    %886 = vmatpush1.msra.mxu0 0.0
    %887 = vmatprep.subr.mxu0 0.0
    %888 = vmatpush1.msra.mxu0 0.0
    %889 = vmatprep.subr.mxu0 0.0
    %890 = vmatpush1.msra.mxu0 0.0
    %891 = vmatprep.subr.mxu0 0.0
    %892 = vmatpush1.msra.mxu0 0.0
    %893 = vmatprep.subr.mxu0 0.0
    %894 = vmatpush1.msra.mxu0 0.0
    %895 = vmatprep.subr.mxu0 0.0
    %896 = vmatpush1.msra.mxu0 0.0
    %897 = vmatprep.subr.mxu0 0.0
    %898 = vmatpush1.msra.mxu0 0.0
    %899 = vmatprep.subr.mxu0 0.0
    %900 = vmatpush1.msra.mxu0 0.0
    %901 = vmatprep.subr.mxu0 0.0
    %902 = vmatpush1.msra.mxu0 0.0
    %903 = vmatprep.subr.mxu0 0.0
    %904 = vmatpush1.msra.mxu0 0.0
    %905 = vmatprep.subr.mxu0 0.0
    %906 = vmatpush1.msra.mxu0 0.0
    %907 = vmatprep.subr.mxu0 0.0
    %908 = vmatpush1.msra.mxu0 0.0
    %909 = vmatprep.mubr.f32.mxu0 0.0
    %910 = vmatmul.mubr.f32.gmra.mrb[0].mxu0 %v760
    %v911 = vpop.f32.mrb[0].mxu0
    %v912 = vadd.f32 %v757, %v911
    %v913 = vpop.f32.mrb[0].mxu0
    %v914 = vadd.f32 %v757, %v913
    %915 = vdwg.mxu0
    %v916 = vadd.f32 %v841, %v48
    %v917 = vadd.f32 %v843, %v57
    %v918 = vadd.f32 %v912, %v49
    %v919 = vadd.f32 %v914, %v58
    %v920 = vmax.f32 %v916, 0.0
    %v921 = vmax.f32 %v917, 0.0
    %v922 = vmax.f32 %v918, 0.0
    %v923 = vmax.f32 %v919, 0.0
    %v928 = vcombine.low %v920, %v921
    %v929 = vcombine.low %v922, %v923
    %932 = vst [vmem:[#allocation7] sm:$0xff] %v928
    %933 = vst [vmem:[#allocation7 + $0x8] sm:$0xff] %v929
    // Predicated region
    $region34: #{tpu_custom_call.1} parent=1 // pred_check
      _
    $region35: #{tpu_custom_call.1} parent=1 // pred_check_branch
      %935 = sbr.rel (0) target = $region37
    $region36: #{tpu_custom_call.1} parent=1 // pred_region
      %s937 = ssub.s32 256, 256
      %938 = vsyncadd [#allocation4], %s937
      %s940 = sshll.u32 [#allocation7], 4
      %s941 = int_to_ptr.vmem [resolvable:$true] %s940
      %943 = dma.vmem_to_hbm [thread:$0]  %s941, 256, %s6, [#allocation4]
    $region37: #{tpu_custom_call.1} parent=1 // pred_fallthru
      _
    // Predicated region
    $region38: #{tpu_custom_call.1} parent=1 // pred_check
      _
    $region39: #{tpu_custom_call.1} parent=1 // pred_check_branch
      %945 = sbr.rel (0) target = $region41
    $region40: #{tpu_custom_call.1} parent=1 // pred_region
      %946 = dma.done [#allocation4], 256
    $region41: #{tpu_custom_call.1} parent=1 // pred_fallthru
      _
    %947 = vsyncpa [#allocation3], 1
    %948 = vsyncpa [#allocation6], 1
    %949 = vsyncpa [#allocation4], 1

</llo_original>
